<compile_context>
chip_gen: v7x
topology: tpu7x:2x2x1
jax: 0.10.0
libtpu: 0.0.40
codegen_flags: <defaults>
</compile_context>

<pallas_src>
import numpy as np
import jax
import jax.numpy as jnp
from jax.experimental import pallas as pl
from jax.experimental.pallas import tpu as pltpu


def _round_up(x, m):
    return ((x + m - 1) // m) * m


def features_linear_kernel(idx_ref, offs_ref, w_ref, bias_ref, out_ref):
    # idx_ref : (F, TB) int   -- raw per-field indices, batch on lanes
    # offs_ref: (F, 1)  int32 -- per-field vocab offsets (lane-broadcast)
    # w_ref   : (1, V)  f32   -- weight row (sublane-broadcast in-kernel)
    # bias_ref: (1, 1)  f32   -- scalar in SMEM
    # out_ref : (1, TB) f32   -- lane-dense output (batch on lanes)
    F = idx_ref.shape[0]
    V = w_ref.shape[1]

    # Widen narrow index dtypes in-kernel (no extra HBM pass) and fold offsets.
    idx = idx_ref[...].astype(jnp.int32) + offs_ref[...]          # (F, TB)

    # Broadcast the (1, V) weight row across the F sublanes, then lane-gather:
    # vals[f, b] = w[idx[f, b]].  Indices are in-bounds by construction
    # (matches the PyTorch contract where OOB would be an error).
    w = jnp.broadcast_to(w_ref[...], (F, V))                      # (F, V)
    vals = jnp.take_along_axis(w, idx, axis=1, mode="promise_in_bounds")

    # Field reduction = sublane reduce -> (1, TB); add bias; full-lane store.
    out_ref[...] = jnp.sum(vals, axis=0, keepdims=True) + bias_ref[0, 0]


def features_linear(x_idx, offsets, weight, bias, *, block_b=8192):
    """x_idx: (B, F) int, offsets: (F,) int, weight: (V, 1) f32, bias: (1,) f32."""
    B, F = x_idx.shape
    V = weight.shape[0]
    # Single-lane-tile gather path only (see TODO above for V > 128).
    assert V <= 128, "features_linear: V-tiled gather path not implemented"

    # Keep indices narrow (int8/int16/int32 pass straight through); only cast
    # if the caller hands something wider than 32 bits.
    if x_idx.dtype.itemsize > 4:
        x_idx = x_idx.astype(jnp.int32)

    # Tile sizing: as large as useful, but keep >= 2 grid steps so v7x's two
    # TensorCores both get work from the "parallel" batch axis.
    cap = max(128, _round_up(pl.cdiv(B, 2), 128))
    block_b = max(128, min(block_b, cap))
    b_pad = pl.cdiv(B, block_b) * block_b

    idx = x_idx
    if b_pad != B:
        # Padded rows gather w[offsets[f]] (in-bounds) and are sliced off below.
        idx = jnp.pad(idx, ((0, b_pad - B), (0, 0)))

    # Single relayout pass: fields -> sublanes, batch -> lanes.
    idx_t = idx.T                                                  # (F, b_pad)
    offs2d = offsets.astype(jnp.int32).reshape(F, 1)               # (F, 1)
    w_row = weight.reshape(1, V).astype(jnp.float32)               # (1, V)
    bias2d = bias.reshape(1, 1).astype(jnp.float32)                # (1, 1)

    idx_bytes = b_pad * F * idx_t.dtype.itemsize
    cost = pl.CostEstimate(
        flops=2 * b_pad * F,                 # offset add + field sum
        transcendentals=0,
        bytes_accessed=idx_bytes + V * 4 + b_pad * 4 + F * 4 + 4,
    )

    grid = (b_pad // block_b,)
    out = pl.pallas_call(
        features_linear_kernel,
        out_shape=jax.ShapeDtypeStruct((1, b_pad), jnp.float32),
        grid=grid,
        in_specs=[
            # (F, block_b) tile of transposed indices, marching over batch.
            pl.BlockSpec((F, block_b), lambda i: (0, i)),
            # Per-field offsets: constant tiny block, stays resident.
            pl.BlockSpec((F, 1), lambda i: (0, 0)),
            # Un-broadcast weight row: constant block, stays resident.
            pl.BlockSpec((1, V), lambda i: (0, 0)),
            # Bias scalar in SMEM.
            pl.BlockSpec((1, 1), lambda i: (0, 0),
                         memory_space=pltpu.MemorySpace.SMEM),
        ],
        out_specs=pl.BlockSpec((1, block_b), lambda i: (0, i)),
        compiler_params=pltpu.CompilerParams(
            dimension_semantics=("parallel",)),   # shard batch across v7x's 2 TCs
        cost_estimate=cost,
    )(idx_t, offs2d, w_row, bias2d)

    # Back to the PyTorch (B, 1) shape.
    return out[0, :B].reshape(B, 1)


if __name__ == "__main__":
    # Module config (small, deterministic). 8 fields, total vocab = 128 so the
    # weight row is exactly one lane tile.
    field_dims = [13, 7, 32, 20, 9, 11, 25, 11]
    V = sum(field_dims)          # 128
    F = len(field_dims)          # 8
    B = 256                      # capped tile -> two 128-row grid steps

    # offsets = (0, *cumsum(field_dims)[:-1])
    offsets = jnp.array([0] + list(np.cumsum(field_dims)[:-1]), dtype=jnp.int32)

    key = jax.random.PRNGKey(0)
    kw, kx = jax.random.split(key)

    # Deterministic xavier_uniform for nn.Embedding(V, 1).weight: fan_in=1, fan_out=V
    bound = float(np.sqrt(6.0 / (1 + V)))
    weight = jax.random.uniform(kw, (V, 1), jnp.float32, -bound, bound)
    bias = jnp.zeros((1,), jnp.float32)

    # Per-field valid indices in [0, field_dims[f])
    keys = jax.random.split(kx, F)
    cols = [jax.random.randint(keys[f], (B,), 0, field_dims[f]) for f in range(F)]
    x = jnp.stack(cols, axis=1).astype(jnp.int32)  # (B, F)

    out = features_linear(x, offsets, weight, bias)
    jax.block_until_ready(out)

    # Pure-JAX reference check
    ref = weight[(x + offsets[None, :]), 0].sum(axis=1, keepdims=True) + bias
    assert out.shape == (B, 1)
    assert jnp.allclose(out, ref, atol=1e-5, rtol=1e-5), (out, ref)

    print("KERNEL_OK")
</pallas_src>

<mosaic_0001>
module attributes {stable_mosaic.version = 11 : i64} {
  func.func @features_linear_kernel(%arg0: i32, %arg1: memref<8x128xi32, #tpu.memory_space<vmem>>, %arg2: memref<8x1xi32, #tpu.memory_space<vmem>>, %arg3: memref<1x128xf32, #tpu.memory_space<vmem>>, %arg4: memref<1x1xf32, #tpu.memory_space<smem>>, %arg5: memref<1x128xf32, #tpu.memory_space<vmem>>) attributes {dimension_semantics = [#tpu.dimension_semantics<parallel>], iteration_bounds = array<i64: 2>, scalar_prefetch = 0 : i64, scratch_operands = 0 : i64, tpu.core_type = #tpu.core_type<tc>, window_params = [{transform_indices = @transform_0, window_bounds = array<i64: 8, 128>}, {pipeline_mode = #tpu.pipeline_mode<synchronous>, transform_indices = @transform_1, window_bounds = array<i64: 8, 1>}, {pipeline_mode = #tpu.pipeline_mode<synchronous>, transform_indices = @transform_2, window_bounds = array<i64: 1, 128>}, {transform_indices = @transform_3, window_bounds = array<i64: 1, 1>}, {transform_indices = @transform_4, window_bounds = array<i64: 1, 128>}]} {
    %c0 = arith.constant 0 : index
    %c0_0 = arith.constant 0 : index
    %0 = vector.load %arg1[%c0, %c0_0] : memref<8x128xi32, #tpu.memory_space<vmem>>, vector<8x128xi32>
    %c0_1 = arith.constant 0 : index
    %c0_2 = arith.constant 0 : index
    %1 = vector.load %arg2[%c0_1, %c0_2] : memref<8x1xi32, #tpu.memory_space<vmem>>, vector<8x1xi32>
    %2 = vector.broadcast %1 : vector<8x1xi32> to vector<8x128xi32>
    %3 = arith.addi %0, %2 : vector<8x128xi32>
    %c0_3 = arith.constant 0 : index
    %c0_4 = arith.constant 0 : index
    %4 = vector.load %arg3[%c0_3, %c0_4] : memref<1x128xf32, #tpu.memory_space<vmem>>, vector<1x128xf32>
    %5 = vector.shape_cast %4 : vector<1x128xf32> to vector<1x128xf32>
    %6 = vector.broadcast %5 : vector<1x128xf32> to vector<8x128xf32>
    %7 = vector.shape_cast %3 : vector<8x128xi32> to vector<8x128x1xi32>
    %8 = vector.shape_cast %7 : vector<8x128x1xi32> to vector<8x128xi32>
    %9 = tpu.dynamic_gather %6[%8] in [1] : vector<8x128xf32>, vector<8x128xi32> -> vector<8x128xf32>
    %cst = arith.constant dense<0.000000e+00> : vector<128xf32>
    %10 = vector.multi_reduction <add>, %9, %cst [0] : vector<8x128xf32> to vector<128xf32>
    %11 = vector.shape_cast %10 : vector<128xf32> to vector<1x128xf32>
    %c0_5 = arith.constant 0 : index
    %c0_6 = arith.constant 0 : index
    %12 = memref.load %arg4[%c0_5, %c0_6] : memref<1x1xf32, #tpu.memory_space<smem>>
    %13 = vector.broadcast %12 : f32 to vector<1x128xf32>
    %14 = arith.addf %11, %13 : vector<1x128xf32>
    %c0_7 = arith.constant 0 : index
    %c0_8 = arith.constant 0 : index
    %15 = vector.load %arg5[%c0_7, %c0_8] : memref<1x128xf32, #tpu.memory_space<vmem>>, vector<1x128xf32>
    tpu.vector_store %arg5[%c0_7, %c0_8], %14 {strides = array<i32>} : memref<1x128xf32, #tpu.memory_space<vmem>>, vector<1x128xf32>,
    return
  }
  func.func @transform_0(%arg0: i32) -> (i32, i32) {
    %c0_i32 = arith.constant 0 : i32
    %c0_i32_0 = arith.constant 0 : i32
    return %c0_i32, %arg0 : i32, i32
  }
  func.func @transform_1(%arg0: i32) -> (i32, i32) {
    %c0_i32 = arith.constant 0 : i32
    %c0_i32_0 = arith.constant 0 : i32
    %c0_i32_1 = arith.constant 0 : i32
    return %c0_i32, %c0_i32_0 : i32, i32
  }
  func.func @transform_2(%arg0: i32) -> (i32, i32) {
    %c0_i32 = arith.constant 0 : i32
    %c0_i32_0 = arith.constant 0 : i32
    %c0_i32_1 = arith.constant 0 : i32
    return %c0_i32, %c0_i32_0 : i32, i32
  }
  func.func @transform_3(%arg0: i32) -> (i32, i32) {
    %c0_i32 = arith.constant 0 : i32
    %c0_i32_0 = arith.constant 0 : i32
    %c0_i32_1 = arith.constant 0 : i32
    return %c0_i32, %c0_i32_0 : i32, i32
  }
  func.func @transform_4(%arg0: i32) -> (i32, i32) {
    %c0_i32 = arith.constant 0 : i32
    %c0_i32_0 = arith.constant 0 : i32
    return %c0_i32, %arg0 : i32, i32
  }
}

</mosaic_0001>

<llo_original>
// kernel: tpu_custom_call.1
$region0: #{tpu_custom_call.1}
  #allocation0 [shape = 'u32[]', space=smem, size = 0x4, offset = 0x4, fixed_abs, tag = 'smem constant byte address 0x4 - core index']
  #allocation1 [shape = 'u32[144,128]{1,0:T(1,128)}', space=vmem, size = 0x12000, scoped, tag = 'internal scratch']
  #allocation2 [shape = 'f32[1,1]{1,0:T(1,128)S(6)}', space=smem, size = 0x200, scoped, tag = 'scoped memory for tpu_custom_call.1']
  %s0 = inlined_call_operand.hbm [shape: s32[8,256], index: 0, kind: input, shape index: {}]
  %s1 = inlined_call_operand.vmem [shape: s32[8,1], index: 1, kind: input, shape index: {}]
  %s2 = inlined_call_operand.vmem [shape: f32[1,128], index: 2, kind: input, shape index: {}]
  %s3 = inlined_call_operand.<no memory space> [shape: f32[1,1], index: 3, kind: input, shape index: {}]
  %s4 = inlined_call_operand.hbm [shape: f32[1,256], index: 4, kind: output, shape index: {}]
  %s5 = sld [smem:[#allocation0]]
  $region53: #{tpu_custom_call.1} parent=0
    _
  %s7 = ssub.s32 1, %s5
  %s8 = scalar_select 0, %s7, %s5
  %9 = sst [smem:[#allocation2]] %s3
  $region1: #{tpu_custom_call.1} parent=0
    #allocation3 [shape = 'u8[8192]{0}', space=vmem, size = 0x2000, scoped, tag = 'input window, operand 0']
    #allocation4 [shape = 's32[2]{0}', space=sflag, size = 0x8, scoped, tag = 'scoped memory for tpu_custom_call.1']
    #allocation5 [shape = 's32[2]{0}', space=sflag, size = 0x8, scoped, tag = 'scoped memory for tpu_custom_call.1']
    #allocation6 [shape = 'u8[1024]{0}', space=vmem, size = 0x400, scoped, tag = 'output window, operand 0']
    %10 = vsyncpa [#allocation4], 0
    %s11 = scalar_lea.sflag [#allocation4], 1
    %12 = vsyncpa %s11, 0
    %13 = vsyncpa [#allocation5], 0
    %s14 = scalar_lea.sflag [#allocation5], 1
    %15 = vsyncpa %s14, 0
    loop: start=0, step=1, limit=4
    $region2: #{tpu_custom_call.1} parent=1 // loop_pre_header
      _
    $region3: #{tpu_custom_call.1} parent=1 // loop_header
      %s17 = sphi 0, %s21
      %p18 = scmp.ge.s32.totalorder %s17, 4
      %s27 = sphi 0, %s29
      %s30 = sphi 0, %s27
      %s31 = sphi 0, %s30
      %s47 = sphi 0, %s31
      %s51 = sphi 0, %s51
      %s53 = sphi 0, %s51
      %s54 = sphi 0, %s53
      %s68 = sphi 0, %s54
      %s72 = sphi 0, %s72
      %s74 = sphi 0, %s72
      %s75 = sphi 0, %s74
      %s89 = sphi 0, %s75
      %s93 = sphi 0, %s93
      %s95 = sphi 0, %s93
      %s96 = sphi 0, %s95
      %s110 = sphi 0, %s96
      %s116 = sphi 0, %s118
      %s119 = sphi 0, %s116
      %s120 = sphi 0, %s119
      %s136 = sphi 0, %s120
    $region4: #{tpu_custom_call.1} parent=1 // loop_header_branch
      %20 = sbr.rel (%p18) target = $region8
    $region5: #{tpu_custom_call.1} parent=1 // loop_body
      %s22 = ssub.s32 %s17, 1
      %s23 = ssub.s32 %s17, 2
      %s24 = sadd.s32 %s17, 1
      %s25 = ssub.s32 %s17, %s24
      %p26 = scmp.eq.s32.totalorder %s25, 0
      %s28 = sadd.s32 %s27, 1
      %s29 = scalar_select %p26, %s27, %s28
      %p32 = pneg %p26
      %p33 = scmp.eq.s32.totalorder %s17, 1
      %p34 = por %p32, %p33
      %p35 = scmp.ne.s32.totalorder %s27, %s30
      %p36 = scmp.eq.s32.totalorder %s17, 0
      %p37 = por %p35, %p36
      %p38 = scmp.ne.s32.totalorder %s27, %s30
      %p39 = scmp.eq.s32.totalorder %s22, 1
      %p40 = por %p38, %p39
      %p41 = scmp.ne.s32.totalorder %s30, %s31
      %p42 = scmp.eq.s32.totalorder %s22, 0
      %p43 = por %p41, %p42
      %p44 = scmp.ne.s32.totalorder %s30, %s31
      %p45 = scmp.eq.s32.totalorder %s23, 1
      %p46 = por %p44, %p45
      %p48 = scmp.ne.s32.totalorder %s31, %s47
      %p49 = scmp.eq.s32.totalorder %s23, 0
      %p50 = por %p48, %p49
      %s52 = sadd.s32 %s51, 1
      %p55 = scmp.eq.s32.totalorder %s17, 1
      %p56 = scmp.ne.s32.totalorder %s51, %s53
      %p57 = scmp.eq.s32.totalorder %s17, 0
      %p58 = por %p56, %p57
      %p59 = scmp.ne.s32.totalorder %s51, %s53
      %p60 = scmp.eq.s32.totalorder %s22, 1
      %p61 = por %p59, %p60
      %p62 = scmp.ne.s32.totalorder %s53, %s54
      %p63 = scmp.eq.s32.totalorder %s22, 0
      %p64 = por %p62, %p63
      %p65 = scmp.ne.s32.totalorder %s53, %s54
      %p66 = scmp.eq.s32.totalorder %s23, 1
      %p67 = por %p65, %p66
      %p69 = scmp.ne.s32.totalorder %s54, %s68
      %p70 = scmp.eq.s32.totalorder %s23, 0
      %p71 = por %p69, %p70
      %s73 = sadd.s32 %s72, 1
      %p76 = scmp.eq.s32.totalorder %s17, 1
      %p77 = scmp.ne.s32.totalorder %s72, %s74
      %p78 = scmp.eq.s32.totalorder %s17, 0
      %p79 = por %p77, %p78
      %p80 = scmp.ne.s32.totalorder %s72, %s74
      %p81 = scmp.eq.s32.totalorder %s22, 1
      %p82 = por %p80, %p81
      %p83 = scmp.ne.s32.totalorder %s74, %s75
      %p84 = scmp.eq.s32.totalorder %s22, 0
      %p85 = por %p83, %p84
      %p86 = scmp.ne.s32.totalorder %s74, %s75
      %p87 = scmp.eq.s32.totalorder %s23, 1
      %p88 = por %p86, %p87
      %p90 = scmp.ne.s32.totalorder %s75, %s89
      %p91 = scmp.eq.s32.totalorder %s23, 0
      %p92 = por %p90, %p91
      %s94 = sadd.s32 %s93, 1
      %p97 = scmp.eq.s32.totalorder %s17, 1
      %p98 = scmp.ne.s32.totalorder %s93, %s95
      %p99 = scmp.eq.s32.totalorder %s17, 0
      %p100 = por %p98, %p99
      %p101 = scmp.ne.s32.totalorder %s93, %s95
      %p102 = scmp.eq.s32.totalorder %s22, 1
      %p103 = por %p101, %p102
      %p104 = scmp.ne.s32.totalorder %s95, %s96
      %p105 = scmp.eq.s32.totalorder %s22, 0
      %p106 = por %p104, %p105
      %p107 = scmp.ne.s32.totalorder %s95, %s96
      %p108 = scmp.eq.s32.totalorder %s23, 1
      %p109 = por %p107, %p108
      %p111 = scmp.ne.s32.totalorder %s96, %s110
      %p112 = scmp.eq.s32.totalorder %s23, 0
      %p113 = por %p111, %p112
      %s114 = ssub.s32 %s17, %s24
      %p115 = scmp.eq.s32.totalorder %s114, 0
      %s117 = sadd.s32 %s116, 1
      %s118 = scalar_select %p115, %s116, %s117
      %p121 = pneg %p115
      %p122 = scmp.eq.s32.totalorder %s17, 1
      %p123 = por %p121, %p122
      %p124 = scmp.ne.s32.totalorder %s116, %s119
      %p125 = scmp.eq.s32.totalorder %s17, 0
      %p126 = por %p124, %p125
      %p127 = scmp.ne.s32.totalorder %s116, %s119
      %p128 = scmp.eq.s32.totalorder %s22, 1
      %p129 = por %p127, %p128
      %p130 = scmp.ne.s32.totalorder %s119, %s120
      %p131 = scmp.eq.s32.totalorder %s22, 0
      %p132 = por %p130, %p131
      %p133 = scmp.ne.s32.totalorder %s119, %s120
      %p134 = scmp.eq.s32.totalorder %s23, 1
      %p135 = por %p133, %p134
      %p137 = scmp.ne.s32.totalorder %s120, %s136
      %p138 = scmp.eq.s32.totalorder %s23, 0
      %p139 = por %p137, %p138
      %p140 = scmp.le.s32.totalorder 1, %s17
      %p141 = scmp.lt.s32.totalorder %s17, 3
      %p142 = pnand %p140, %p141
      %p143 = pneg %p142
      // Predicated region
      $region9: #{tpu_custom_call.1} parent=5 // pred_check
        _
      $region10: #{tpu_custom_call.1} parent=5 // pred_check_branch
        %145 = sbr.rel (%p142) target = $region12
      $region11: #{tpu_custom_call.1} parent=5 // pred_region
        %s146 = ssub.s32 %s17, 1
        // Predicated region
        $region13: #{tpu_custom_call.1} parent=11 // pred_check
          %p147 = pneg %p64
        $region14: #{tpu_custom_call.1} parent=11 // pred_check_branch
          %149 = sbr.rel (%p147) target = $region16
        $region15: #{tpu_custom_call.1} parent=11 // pred_region
          _
        $region16: #{tpu_custom_call.1} parent=11 // pred_fallthru
          _
        // Predicated region
        $region17: #{tpu_custom_call.1} parent=11 // pred_check
          %p150 = pneg %p85
        $region18: #{tpu_custom_call.1} parent=11 // pred_check_branch
          %152 = sbr.rel (%p150) target = $region20
        $region19: #{tpu_custom_call.1} parent=11 // pred_region
          _
        $region20: #{tpu_custom_call.1} parent=11 // pred_fallthru
          _
        // Predicated region
        $region21: #{tpu_custom_call.1} parent=11 // pred_check
          %p153 = pneg %p106
        $region22: #{tpu_custom_call.1} parent=11 // pred_check_branch
          %155 = sbr.rel (%p153) target = $region24
        $region23: #{tpu_custom_call.1} parent=11 // pred_region
          _
        $region24: #{tpu_custom_call.1} parent=11 // pred_fallthru
          _
      $region12: #{tpu_custom_call.1} parent=5 // pred_fallthru
        _
      %p156 = scmp.lt.s32.totalorder %s17, 2
      // Predicated region
      $region25: #{tpu_custom_call.1} parent=5 // pred_check
        %p157 = pneg %p156
      $region26: #{tpu_custom_call.1} parent=5 // pred_check_branch
        %159 = sbr.rel (%p157) target = $region28
      $region27: #{tpu_custom_call.1} parent=5 // pred_region
        // Predicated region
        $region29: #{tpu_custom_call.1} parent=27 // pred_check
          %p160 = pneg %p37
        $region30: #{tpu_custom_call.1} parent=27 // pred_check_branch
          %162 = sbr.rel (%p160) target = $region32
        $region31: #{tpu_custom_call.1} parent=27 // pred_region
          %s163 = sand.u32 %s27, 1
          %s164 = scalar_lea.sflag [#allocation4], %s163
          %s165 = sand.u32 %s27, 1
          %s166 = smul.addr %s165, 8
          %s167 = scalar_lea.vmem [#allocation3], %s166
          %s169 = ssub.s32 128, 128
          %170 = vsyncadd %s164, %s169
          %s171 = smul.addr %s17, 128
          %s172 = scalar_lea.hbm %s0, %s171
          %s174 = sshll.u32 %s167, 4
          %s175 = int_to_ptr.vmem [resolvable:$true] %s174
          %177 = dma.hbm_to_vmem [thread:$0]  %s172, 128, %s175, %s164
        $region32: #{tpu_custom_call.1} parent=27 // pred_fallthru
          _
      $region28: #{tpu_custom_call.1} parent=5 // pred_fallthru
        _
      %p178 = scmp.le.s32.totalorder 1, %s17
      %p179 = scmp.lt.s32.totalorder %s17, 3
      %p180 = pnand %p178, %p179
      %p181 = pneg %p180
      // Predicated region
      $region33: #{tpu_custom_call.1} parent=5 // pred_check
        _
      $region34: #{tpu_custom_call.1} parent=5 // pred_check_branch
        %183 = sbr.rel (%p180) target = $region36
      $region35: #{tpu_custom_call.1} parent=5 // pred_region
        %s184 = ssub.s32 %s17, 1
        %s185 = sand.u32 %s30, 1
        %s186 = scalar_lea.sflag [#allocation4], %s185
        %s187 = sand.u32 %s30, 1
        %s188 = smul.addr %s187, 8
        %s189 = scalar_lea.vmem [#allocation3], %s188
        // Predicated region
        $region37: #{tpu_custom_call.1} parent=35 // pred_check
          %p190 = pneg %p43
        $region38: #{tpu_custom_call.1} parent=35 // pred_check_branch
          %192 = sbr.rel (%p190) target = $region40
        $region39: #{tpu_custom_call.1} parent=35 // pred_region
          %193 = dma.done %s186, 128
        $region40: #{tpu_custom_call.1} parent=35 // pred_fallthru
          _
        %s194 = sand.u32 %s30, 1
        %s195 = scalar_lea.sflag [#allocation4], %s194
        %s196 = sand.u32 %s30, 1
        %s197 = smul.addr %s196, 8
        %s198 = scalar_lea.vmem [#allocation3], %s197
        %p199 = pneg %p43
        %p200 = pneg %p40
        %p201 = pneg %p64
        %p202 = pneg %p61
        %p203 = pneg %p85
        %p204 = pneg %p82
        %p205 = pneg %p106
        %p206 = pneg %p103
        %p207 = pneg %p132
        %p208 = pneg %p129
        %s209 = sand.u32 %s119, 1
        %s210 = scalar_lea.sflag [#allocation5], %s209
        %s211 = sand.u32 %s119, 1
        %s212 = scalar_lea.vmem [#allocation6], %s211
        %v213 = vld [vmem:[%s189] sm:$0xff]
        %v214 = vld [vmem:[%s1] sm:$0xff]
        %215 = vset.pattern.permute.xlu0 0
        %216 = vperm.xlu0 %215, %v214
        %v217 = vpop.permute.xlu0 %216
        %v218 = vadd.s32 %v213, %v217
        %v219 = vld [vmem:[%s2] sm:$0x1]
        %v221 = vlaneseq
        %v222 = vshrl.u32 %v221, 7
        %v223 = vsub.s32 0, %v222
        %v224 = vrot.slane %v219, %v223
        %226 = vset.pattern.permute.xlu0 %v218
        %227 = vperm.xlu0 %226, %v224
        %v228 = vpop.permute.xlu0 %227
        %v229 = vrot.slane %v228, 4
        %v230 = vadd.f32 %v228, %v229
        %v231 = vrot.slane %v230, 2
        %v232 = vadd.f32 %v230, %v231
        %v233 = vrot.slane %v232, 1
        %v234 = vadd.f32 %v232, %v233
        %s235 = sld [smem:[#allocation2]]
        %v236 = vstv %s235
        %v237 = vadd.f32 %v234, %v236
        %238 = vst [vmem:[%s212] sm:$0x1] %v237
        %s239 = sand.u32 %s119, 1
        %s240 = scalar_lea.sflag [#allocation5], %s239
        %s241 = sand.u32 %s119, 1
        %s242 = scalar_lea.vmem [#allocation6], %s241
        // Predicated region
        $region41: #{tpu_custom_call.1} parent=35 // pred_check
          %p243 = pneg %p129
        $region42: #{tpu_custom_call.1} parent=35 // pred_check_branch
          %245 = sbr.rel (%p243) target = $region44
        $region43: #{tpu_custom_call.1} parent=35 // pred_region
          %s247 = ssub.s32 16, 16
          %248 = vsyncadd %s240, %s247
          %s249 = smul.addr %s22, 16
          %s250 = scalar_lea.hbm %s4, %s249
          %s252 = sshll.u32 %s242, 4
          %s253 = int_to_ptr.vmem [resolvable:$true] %s252
          %255 = dma.vmem_to_hbm [thread:$0]  %s253, 16, %s250, %s240
        $region44: #{tpu_custom_call.1} parent=35 // pred_fallthru
          _
      $region36: #{tpu_custom_call.1} parent=5 // pred_fallthru
        _
      %p256 = scmp.le.s32.totalorder 2, %s17
      // Predicated region
      $region45: #{tpu_custom_call.1} parent=5 // pred_check
        %p257 = pneg %p256
      $region46: #{tpu_custom_call.1} parent=5 // pred_check_branch
        %259 = sbr.rel (%p257) target = $region48
      $region47: #{tpu_custom_call.1} parent=5 // pred_region
        %s260 = ssub.s32 %s17, 2
        // Predicated region
        $region49: #{tpu_custom_call.1} parent=47 // pred_check
          %p261 = pneg %p135
        $region50: #{tpu_custom_call.1} parent=47 // pred_check_branch
          %263 = sbr.rel (%p261) target = $region52
        $region51: #{tpu_custom_call.1} parent=47 // pred_region
          %s264 = sand.u32 %s120, 1
          %s265 = scalar_lea.sflag [#allocation5], %s264
          %s266 = sand.u32 %s120, 1
          %s267 = scalar_lea.vmem [#allocation6], %s266
          %268 = dma.done %s265, 16
        $region52: #{tpu_custom_call.1} parent=47 // pred_fallthru
          _
      $region48: #{tpu_custom_call.1} parent=5 // pred_fallthru
        _
    $region6: #{tpu_custom_call.1} parent=1 // loop_footer
      %s21 = sadd.s32 1, %s17
    $region7: #{tpu_custom_call.1} parent=1 // loop_footer_branch
      %16 = sbr.rel target = $region3
    $region8: #{tpu_custom_call.1} parent=1 // loop_exit
      _
    %269 = vsyncpa [#allocation4], 1
    %s270 = scalar_lea.sflag [#allocation4], 1
    %271 = vsyncpa %s270, 1
    %272 = vsyncpa [#allocation5], 1
    %s273 = scalar_lea.sflag [#allocation5], 1
    %274 = vsyncpa %s273, 1

</llo_original>
